<compile_context>
chip_gen: v7x
topology: tpu7x:2x2x1
jax: 0.10.0
libtpu: 0.0.40
codegen_flags: <defaults>
</compile_context>

<pallas_src>
import functools

import numpy as np
import jax
import jax.numpy as jnp
from jax.experimental import pallas as pl
from jax.experimental.pallas import tpu as pltpu


def _cdiv(a, b):
    return -(-a // b)


# ----------------------------------------------------------------------------
# In-kernel GELUs
# ----------------------------------------------------------------------------

_ERF_P = 0.3275911
_ERF_A1 = 0.254829592
_ERF_A2 = -0.284496736
_ERF_A3 = 1.421413741
_ERF_A4 = -1.453152027
_ERF_A5 = 1.061405429


def _gelu_erf(v):
    """erf-polynomial GELU (A&S 7.1.26); reciprocal on the EUP slot.  Used inside the
    MLP matmul kernel where the VALU work hides under weight DMA."""
    s = jnp.sign(v)
    z = jnp.abs(v)
    t = pl.reciprocal(1.0 + _ERF_P * z, approx=True)
    poly = ((((_ERF_A5 * t + _ERF_A4) * t + _ERF_A3) * t + _ERF_A2) * t + _ERF_A1) * t
    erf = s * (1.0 - poly * jnp.exp(-z * z))
    return 0.5 * v * (1.0 + erf)


_SQRT_2_OVER_PI = 0.7978845608028654


def _gelu_tanh(v):
    """tanh-form GELU: tanh runs on the EUP, keeping the (only 4) VALU slots free in the
    elementwise-bound bypass kernel."""
    return 0.5 * v * (1.0 + jnp.tanh(_SQRT_2_OVER_PI * (v + 0.044715 * v * v * v)))


# ----------------------------------------------------------------------------
# Pallas kernel 1: blocked per-m Legendre contraction (bf16 in, f32 accumulate)
# ----------------------------------------------------------------------------

def _legendre_kernel(w_ref, a_ref, o_ref):
    # w_ref: (tm, L, K) bf16, a_ref: (1, tm, K, N) bf16 -> o_ref: (1, tm, L, N) f32
    o_ref[0] = jnp.einsum(
        "mlk,mkn->mln", w_ref[...], a_ref[0], preferred_element_type=jnp.float32
    )


def legendre_contract(wmat, data):
    """out[b, m, l, n] = sum_k wmat[m, l, k] * data[b, m, k, n].

    wmat: (M, L, K); data: (B, M, K, N).  Returns (B, M, L, N) float32.
    bf16 operands with f32 MXU accumulation.  Grid = (m-blocks, B) with the batch axis
    innermost so each weight block is DMA'd once per m-block and reused across B.
    """
    M, L, K = wmat.shape
    B, M2, K2, N = data.shape
    assert M2 == M and K2 == K

    wmat = wmat.astype(jnp.bfloat16)
    data = data.astype(jnp.bfloat16)

    # Biggest m-tile that fits a ~8 MiB single-buffered working set, but always >= 2
    # blocks so v7x's second TensorCore gets work and DMA/compute overlap is restored.
    per_m_bytes = 2 * K * N + 2 * L * K + 4 * L * N
    budget = 8 * 1024 * 1024
    tm_cap = max(1, budget // max(per_m_bytes, 1))
    n_blocks = max(2 if M > 1 else 1, _cdiv(M, tm_cap))
    tm = _cdiv(M, n_blocks)
    n_blocks = _cdiv(M, tm)
    Mp = n_blocks * tm
    if Mp != M:
        wmat = jnp.pad(wmat, ((0, Mp - M), (0, 0), (0, 0)))
        data = jnp.pad(data, ((0, 0), (0, Mp - M), (0, 0), (0, 0)))

    # Explicit VMEM limit: 2x double-buffering of (weights + data + output) + headroom.
    vmem_limit = int(min(max(2 * tm * per_m_bytes + (4 << 20), 16 << 20), 40 << 20))

    out = pl.pallas_call(
        _legendre_kernel,
        out_shape=jax.ShapeDtypeStruct((B, Mp, L, N), jnp.float32),
        grid=(n_blocks, B),
        in_specs=[
            pl.BlockSpec((tm, L, K), lambda i, b: (i, 0, 0)),
            pl.BlockSpec((1, tm, K, N), lambda i, b: (b, i, 0, 0)),
        ],
        out_specs=pl.BlockSpec((1, tm, L, N), lambda i, b: (b, i, 0, 0)),
        compiler_params=pltpu.CompilerParams(
            dimension_semantics=("parallel", "parallel"),
            vmem_limit_bytes=vmem_limit,
        ),
    )(wmat, data)
    return out[:, :M] if Mp != M else out


# ----------------------------------------------------------------------------
# Pallas kernel 2: tiled linear layer (bf16 streaming, f32 accumulate, fused GELU)
# ----------------------------------------------------------------------------

def _linear_kernel(x_ref, w_ref, b_ref, o_ref, acc_ref, *, apply_gelu):
    k = pl.program_id(1)

    @pl.when(k == 0)
    def _init():
        acc_ref[...] = jnp.zeros_like(acc_ref)

    acc_ref[...] += jnp.dot(x_ref[...], w_ref[...], preferred_element_type=jnp.float32)

    @pl.when(k == pl.num_programs(1) - 1)
    def _finalize():
        h = acc_ref[...] + b_ref[...]
        if apply_gelu:
            h = _gelu_erf(h)
        o_ref[...] = h.astype(o_ref.dtype)


def _pick_tile(d, candidates=(1024, 512, 256, 128)):
    # Prefer big tiles; 512/1024 are multiples of 256 (v6e/v7x MXU width), 128 is the
    # v5e-friendly floor.  Falls back to the full (untiled) dimension.
    for c in candidates:
        if d % c == 0:
            return c
    return d


def linear_pallas(x, w, b, *, apply_gelu, out_dtype):
    """y = act(x @ w + b).  x: (B, K); w: (K, N) pre-transposed; b: (1, N) or None."""
    B, K = x.shape
    _, N = w.shape
    tk = _pick_tile(K)
    tn = _pick_tile(N)
    if b is None:
        b = jnp.zeros((1, N), jnp.float32)  # last MLP layer has bias=False
    kernel = functools.partial(_linear_kernel, apply_gelu=apply_gelu)

    # VMEM limit sized from the actual tiles (double-buffered inputs/outputs + f32
    # accumulator + headroom) instead of a blanket cap — v7x only has 64 MiB physical.
    out_itemsize = jnp.dtype(out_dtype).itemsize
    blk_bytes = B * tk * 2 + tk * tn * 2 + tn * 4 + B * tn * out_itemsize
    vmem_limit = int(min(max(2 * blk_bytes + B * tn * 4 + (4 << 20), 8 << 20), 40 << 20))

    # TODO(synk): for production shapes (tiny B -> weight-DMA bound) consider
    # pipeline_mode=pl.Buffered(3) on the weight BlockSpec; omitted for portability.
    return pl.pallas_call(
        kernel,
        out_shape=jax.ShapeDtypeStruct((B, N), out_dtype),
        grid=(N // tn, K // tk),  # reduction (K) axis last
        in_specs=[
            pl.BlockSpec((B, tk), lambda j, k: (0, k)),
            pl.BlockSpec((tk, tn), lambda j, k: (k, j)),
            pl.BlockSpec((1, tn), lambda j, k: (0, j)),
        ],
        out_specs=pl.BlockSpec((B, tn), lambda j, k: (0, j)),
        scratch_shapes=[pltpu.VMEM((B, tn), jnp.float32)],
        compiler_params=pltpu.CompilerParams(
            dimension_semantics=("parallel", "arbitrary"),
            vmem_limit_bytes=vmem_limit,
        ),
    )(x.astype(jnp.bfloat16), w.astype(jnp.bfloat16), b.astype(jnp.float32))


# ----------------------------------------------------------------------------
# Pallas kernel 3: fused 1x1 bypass conv + residual add + block activation (GELU)
# ----------------------------------------------------------------------------

def _bypass_act_kernel_mxu(spec_ref, x_ref, w_ref, b_ref, o_ref):
    # spec: (1, Co, T) f32, x: (1, Ci, T) bf16, w: (Co, Ci) bf16, b: (Co, 1) f32
    y = jnp.dot(w_ref[...], x_ref[0], preferred_element_type=jnp.float32)
    y = y + b_ref[...] + spec_ref[0]
    o_ref[0] = _gelu_tanh(y).astype(o_ref.dtype)


def _bypass_act_kernel_vpu(spec_ref, x_ref, w_ref, b_ref, o_ref, *, cin):
    # Tiny channel counts: a Cin x Cout MXU contraction pays issue/drain latency for
    # nothing — use a statically unrolled VPU broadcast-multiply-add instead.
    x = x_ref[0].astype(jnp.float32)        # (Ci, T): bf16 HBM stream -> f32 in-register
    w = w_ref[...]                          # (Co, Ci) f32
    acc = spec_ref[0] + b_ref[...]          # (Co, T) f32
    for ci in range(cin):                   # static unroll (cin < 32 on this path)
        acc = acc + w[:, ci:ci + 1] * x[ci:ci + 1, :]
    o_ref[0] = _gelu_tanh(acc).astype(o_ref.dtype)


def _pick_spatial_tile(hw, cap):
    """Largest spatial tile <= cap that stays layout-legal: a divisor of hw that is a
    multiple of 128, or the full axis."""
    if hw <= cap:
        return hw
    d = (cap // 128) * 128
    while d >= 128:
        if hw % d == 0:
            return d
        d -= 128
    return hw  # no conforming divisor: take the whole axis


def bypass_add_act(spec, x, w, b):
    """GELU(spec + conv1x1(x)); spatial axis flattened last -> lane-dense stores."""
    B, Cout, H, W = spec.shape
    _, Cin, _, _ = x.shape
    HW = H * W

    lane_bytes = 4 * Cout + 2 * Cin + 4 * Cout   # spec f32 + x bf16 + out f32 per lane
    budget = 8 * 1024 * 1024                      # single-buffered per-step target
    t_hw = _pick_spatial_tile(HW, max(128, budget // max(lane_bytes, 1)))
    n_s = HW // t_hw
    if B * n_s < 2 and HW >= 256:                 # keep >= 2 grid blocks (v7x 2nd TC)
        t2 = _pick_spatial_tile(HW, max(128, HW // 2))
        if t2 < HW:
            t_hw, n_s = t2, HW // t2

    spec2 = spec.reshape(B, Cout, HW).astype(jnp.float32)
    x2 = x.reshape(B, Cin, HW).astype(jnp.bfloat16)   # halves the dominant HBM stream

    use_mxu = min(Cin, Cout) >= 32
    if use_mxu:
        kernel = _bypass_act_kernel_mxu
        w_in = w.astype(jnp.bfloat16)
    else:
        kernel = functools.partial(_bypass_act_kernel_vpu, cin=Cin)
        w_in = w.astype(jnp.float32)

    vmem_limit = int(min(max(2 * t_hw * lane_bytes + (4 << 20), 8 << 20), 40 << 20))

    out = pl.pallas_call(
        kernel,
        out_shape=jax.ShapeDtypeStruct((B, Cout, HW), jnp.float32),
        grid=(B, n_s),
        in_specs=[
            pl.BlockSpec((1, Cout, t_hw), lambda bb, s: (bb, 0, s)),
            pl.BlockSpec((1, Cin, t_hw), lambda bb, s: (bb, 0, s)),
            pl.BlockSpec((Cout, Cin), lambda bb, s: (0, 0)),
            pl.BlockSpec((Cout, 1), lambda bb, s: (0, 0)),
        ],
        out_specs=pl.BlockSpec((1, Cout, t_hw), lambda bb, s: (bb, 0, s)),
        compiler_params=pltpu.CompilerParams(
            dimension_semantics=("parallel", "parallel"),
            vmem_limit_bytes=vmem_limit,
        ),
    )(spec2, x2, w_in, b.reshape(Cout, 1).astype(jnp.float32))
    return out.reshape(B, Cout, H, W)


# ----------------------------------------------------------------------------
# SHT basis precompute (host-side numpy constants, cached per (H, W))
# ----------------------------------------------------------------------------

def _clenshaw_curtis(n):
    theta = np.linspace(np.pi, 0.0, n)
    x = np.cos(theta)
    k = np.arange(n)
    C = np.cos(np.outer(k, theta))
    d = np.zeros(n)
    keven = np.arange(0, n, 2)
    d[keven] = 2.0 / (1.0 - keven.astype(np.float64) ** 2)
    w = np.linalg.solve(C, d)
    return x, w


def _legpoly(mmax, lmax, x, norm="ortho", inverse=False, csphase=True):
    nmax = max(mmax, lmax)
    vdm = np.zeros((nmax, nmax, len(x)), dtype=np.float64)
    norm_factor = 1.0 if norm == "ortho" else np.sqrt(4.0 * np.pi)
    norm_factor = 1.0 / norm_factor if inverse else norm_factor
    vdm[0, 0, :] = norm_factor / np.sqrt(4.0 * np.pi)
    for l in range(1, nmax):
        vdm[l - 1, l, :] = np.sqrt(2 * l + 1) * x * vdm[l - 1, l - 1, :]
        vdm[l, l, :] = np.sqrt(
            np.clip((2 * l + 1) * (1 + x) * (1 - x) / 2.0 / l, 0.0, None)
        ) * vdm[l - 1, l - 1, :]
    for l in range(2, nmax):
        for m in range(0, l - 1):
            a = np.sqrt((2 * l - 1) / (l - m) * (2 * l + 1) / (l + m))
            b = np.sqrt((l + m - 1) / (l - m) * (2 * l + 1) / (2 * l - 3) * (l - m - 1) / (l + m))
            vdm[m, l, :] = x * a * vdm[m, l - 1, :] - b * vdm[m, l - 2, :]
    vdm = vdm[:mmax, :lmax]
    if csphase:
        for m in range(1, mmax, 2):
            vdm[m] = -vdm[m]
    return vdm


# ----------------------------------------------------------------------------
# SpectralConv3d module
# ----------------------------------------------------------------------------

class SpectralConv3dPallas:
    def __init__(self, in_channels, out_channels, modes, n_layers=2, hidden_width=4, key=None):
        self.in_channels = in_channels
        self.out_channels = out_channels
        self.modes = tuple(modes)
        d_in = 2 * in_channels * modes[0] * modes[1]
        d_hid = hidden_width * out_channels * modes[0] * modes[1]
        d_out = 2 * out_channels * modes[0] * modes[1]
        dims = [d_in] + [d_hid] * (n_layers - 1) + [d_out]

        # PyTorch-Linear-style init U(-1/sqrt(fan_in), 1/sqrt(fan_in));
        # weights pre-transposed to (in, out) and stored bf16 (streamed to the MXU),
        # biases f32 (added in the f32 epilogue).
        keys = jax.random.split(key, 2 * n_layers)
        layers = []
        for i in range(n_layers):
            bound = 1.0 / np.sqrt(dims[i])
            w = jax.random.uniform(keys[2 * i], (dims[i], dims[i + 1]),
                                   jnp.float32, -bound, bound).astype(jnp.bfloat16)
            b = None
            if i < n_layers - 1:  # last layer has bias=False
                b = jax.random.uniform(keys[2 * i + 1], (1, dims[i + 1]),
                                       jnp.float32, -bound, bound)
            layers.append((w, b))
        self.layers = layers
        self._sht_cache = {}  # (H, W) -> (forward weights, inverse weights)

    def num_modes_x(self, H):
        return min(H, self.modes[0])

    def num_modes_y(self, W):
        return min(W // 2 + 1, self.modes[1])

    def _get_sht_weights(self, H, W):
        cache_key = (H, W)
        if cache_key not in self._sht_cache:
            mx, my = self.num_modes_x(H), self.num_modes_y(W)
            cost, wq = _clenshaw_curtis(H)
            theta = np.flip(np.arccos(np.clip(cost, -1.0, 1.0)))
            ct = np.cos(theta)
            pct_f = _legpoly(my, mx, ct, norm="ortho", inverse=False)       # (my, mx, H)
            # quadrature + the 2*pi rFFT "forward" scale folded in (saves an HBM pass)
            fwd = np.einsum("mlk,k->mlk", pct_f, wq) * (2.0 * np.pi)        # (my, mx, H)
            pct_i = _legpoly(my, mx, ct, norm="ortho", inverse=True)        # (my, mx, H)
            inv = np.transpose(pct_i, (0, 2, 1))                            # (my, H, mx)
            self._sht_cache[cache_key] = (jnp.asarray(fwd, jnp.float32),
                                          jnp.asarray(inv, jnp.float32))
        return self._sht_cache[cache_key]

    def __call__(self, x):
        B, Cin, H, W = x.shape
        m0, m1 = self.modes
        mx, my = self.num_modes_x(H), self.num_modes_y(W)   # guards modes vs grid size
        Cout = self.out_channels
        fwd_w, inv_w = self._get_sht_weights(H, W)

        # ---- forward SHT: rFFT over longitude (XLA) + Legendre contraction (Pallas) ----
        xf = jnp.fft.rfft(x.astype(jnp.float32), axis=-1, norm="forward")[..., :my]
        # single layout pass: m-major, channels last; real/imag concatenated on lanes
        xt = jnp.transpose(xf, (0, 3, 2, 1))                              # (B, my, H, Cin) c64
        a = jnp.concatenate([jnp.real(xt), jnp.imag(xt)], axis=-1)        # (B, my, H, 2Cin)
        coeff = legendre_contract(fwd_w, a)                               # (B, my, mx, 2Cin)

        # zero-pad up to the requested (modes0, modes1) block (as in zero_padding_modes)
        if mx < m0 or my < m1:
            coeff = jnp.pad(coeff, ((0, 0), (0, m1 - my), (0, m0 - mx), (0, 0)))

        # ---- complex MLP on flattened modes (tiled Pallas linears) ----
        # Flatten order (m, l, re/im, c): plain reshape, no transpose / stride-2 gathers.
        feat = coeff.reshape(B, m1 * m0 * 2 * Cin)
        h = feat
        n_layers = len(self.layers)
        for li, (w, b) in enumerate(self.layers):
            last = li == n_layers - 1
            h = linear_pallas(h, w, b, apply_gelu=not last,
                              out_dtype=jnp.float32 if last else jnp.bfloat16)
        out = h.reshape(B, m1, m0, 2 * Cout)
        c = out[:, :my, :mx, :]                      # contiguous slice back to live modes

        # ---- inverse SHT restricted to the nonzero (mx, my) coefficient block ----
        spatial = legendre_contract(inv_w, c)                              # (B, my, H, 2Cout)
        re = jnp.transpose(spatial[..., :Cout], (0, 3, 2, 1))              # (B, Cout, H, my)
        im = jnp.transpose(spatial[..., Cout:], (0, 3, 2, 1))
        xc = (re + 1j * im).astype(jnp.complex64)
        nfreq = W // 2 + 1
        if my < nfreq:                                                     # pad only freq axis
            xc = jnp.pad(xc, ((0, 0), (0, 0), (0, 0), (0, nfreq - my)))
        y = jnp.fft.irfft(xc, n=W, axis=-1, norm="forward")               # (B, Cout, H, W)
        return y.astype(jnp.float32)


# ----------------------------------------------------------------------------
# SFNOBlock3d: spectral conv + 1x1 bypass conv + activation (fused Pallas epilogue)
# ----------------------------------------------------------------------------

class SFNOBlock3dPallas:
    def __init__(self, in_channels, out_channels, modes,
                 spectral_hidden_layers=2, spectral_hidden_width=4, key=None):
        k_spec, k_w, k_b = jax.random.split(key, 3)
        self.spectral_conv = SpectralConv3dPallas(
            in_channels, out_channels, modes,
            n_layers=spectral_hidden_layers, hidden_width=spectral_hidden_width,
            key=k_spec)
        bound = 1.0 / np.sqrt(in_channels)   # Conv2d(k=1) fan_in = in_channels
        self.bypass_w = jax.random.uniform(k_w, (out_channels, in_channels),
                                           jnp.float32, -bound, bound)
        self.bypass_b = jax.random.uniform(k_b, (out_channels,),
                                           jnp.float32, -bound, bound)

    def __call__(self, x):
        spec = self.spectral_conv(x)
        # activation(spectral_conv(x) + bypass_conv(x)) — single fused Pallas kernel
        return bypass_add_act(spec, x, self.bypass_w, self.bypass_b)


# ----------------------------------------------------------------------------
# main
# ----------------------------------------------------------------------------

if __name__ == "__main__":
    key = jax.random.PRNGKey(0)
    k_x, k_p = jax.random.split(key)

    batch, channels, H, W = 2, 4, 16, 16
    modes = (8, 8)

    x = jax.random.normal(k_x, (batch, channels, H, W), dtype=jnp.float32)
    block = SFNOBlock3dPallas(channels, channels, modes,
                              spectral_hidden_layers=2, spectral_hidden_width=4,
                              key=k_p)

    y = block(x)
    y = jax.block_until_ready(y)

    assert y.shape == (batch, channels, H, W), y.shape
    assert y.dtype == jnp.float32, y.dtype
    assert bool(jnp.all(jnp.isfinite(y)))
    print("KERNEL_OK")
</pallas_src>

<mosaic_0001>
module attributes {stable_mosaic.version = 11 : i64} {
  func.func @_legendre_kernel(%arg0: i32, %arg1: i32, %arg2: memref<4x8x16xbf16, #tpu.memory_space<vmem>>, %arg3: memref<1x4x16x8xbf16, #tpu.memory_space<vmem>>, %arg4: memref<1x4x8x8xf32, #tpu.memory_space<vmem>>) attributes {dimension_semantics = [#tpu.dimension_semantics<parallel>, #tpu.dimension_semantics<parallel>], iteration_bounds = array<i64: 2, 2>, scalar_prefetch = 0 : i64, scratch_operands = 0 : i64, tpu.core_type = #tpu.core_type<tc>, window_params = [{transform_indices = @transform_0, window_bounds = array<i64: 4, 8, 16>}, {transform_indices = @transform_1, window_bounds = array<i64: 1, 4, 16, 8>}, {transform_indices = @transform_2, window_bounds = array<i64: 1, 4, 8, 8>}]} {
    %c0 = arith.constant 0 : index
    %c0_0 = arith.constant 0 : index
    %c0_1 = arith.constant 0 : index
    %0 = vector.load %arg2[%c0, %c0_0, %c0_1] : memref<4x8x16xbf16, #tpu.memory_space<vmem>>, vector<4x8x16xbf16>
    %c0_2 = arith.constant 0 : index
    %c0_3 = arith.constant 0 : index
    %c0_4 = arith.constant 0 : index
    %c0_5 = arith.constant 0 : index
    %1 = vector.load %arg3[%c0_2, %c0_3, %c0_4, %c0_5] : memref<1x4x16x8xbf16, #tpu.memory_space<vmem>>, vector<1x4x16x8xbf16>
    %2 = vector.shape_cast %1 : vector<1x4x16x8xbf16> to vector<4x16x8xbf16>
    "tpu.trace_start"() <{level = 10 : i32, message = "mlk,mkn->mln"}> : () -> ()
    %cst = arith.constant dense<0.000000e+00> : vector<4x8x8xf32>
    %3 = tpu.matmul %0, %2, %cst {dimension_numbers = #tpu.dot_dimension_numbers<[2], [1], [1], [2], [0, 0, 0, 1, 1, 2], [0], [0]>} : vector<4x8x16xbf16>, vector<4x16x8xbf16>, vector<4x8x8xf32> -> vector<4x8x8xf32>
    "tpu.trace_stop"() : () -> ()
    %c0_6 = arith.constant 0 : index
    %c0_7 = arith.constant 0 : index
    %c0_8 = arith.constant 0 : index
    %c0_9 = arith.constant 0 : index
    %4 = vector.load %arg4[%c0_6, %c0_7, %c0_8, %c0_9] : memref<1x4x8x8xf32, #tpu.memory_space<vmem>>, vector<1x4x8x8xf32>
    %5 = vector.shape_cast %4 : vector<1x4x8x8xf32> to vector<4x8x8xf32>
    %6 = vector.shape_cast %3 : vector<4x8x8xf32> to vector<1x4x8x8xf32>
    tpu.vector_store %arg4[%c0_6, %c0_7, %c0_8, %c0_9], %6 {strides = array<i32>} : memref<1x4x8x8xf32, #tpu.memory_space<vmem>>, vector<1x4x8x8xf32>,
    return
  }
  func.func @transform_0(%arg0: i32, %arg1: i32) -> (i32, i32, i32) {
    %c0_i32 = arith.constant 0 : i32
    %c0_i32_0 = arith.constant 0 : i32
    %c0_i32_1 = arith.constant 0 : i32
    return %arg0, %c0_i32, %c0_i32_0 : i32, i32, i32
  }
  func.func @transform_1(%arg0: i32, %arg1: i32) -> (i32, i32, i32, i32) {
    %c0_i32 = arith.constant 0 : i32
    %c0_i32_0 = arith.constant 0 : i32
    %c0_i32_1 = arith.constant 0 : i32
    return %arg1, %arg0, %c0_i32, %c0_i32_0 : i32, i32, i32, i32
  }
  func.func @transform_2(%arg0: i32, %arg1: i32) -> (i32, i32, i32, i32) {
    %c0_i32 = arith.constant 0 : i32
    %c0_i32_0 = arith.constant 0 : i32
    %c0_i32_1 = arith.constant 0 : i32
    return %arg1, %arg0, %c0_i32, %c0_i32_0 : i32, i32, i32, i32
  }
}

</mosaic_0001>

<llo_original>
// kernel: tpu_custom_call.1
$region0: #{tpu_custom_call.1}
  #allocation0 [shape = 'u32[]', space=smem, size = 0x4, offset = 0x4, fixed_abs, tag = 'smem constant byte address 0x4 - core index']
  #allocation1 [shape = 'u32[144,128]{1,0:T(1,128)}', space=vmem, size = 0x12000, scoped, tag = 'internal scratch']
  %s0 = inlined_call_operand.vmem [shape: bf16[8,8,16], index: 0, kind: input, shape index: {}]
  %s1 = inlined_call_operand.vmem [shape: bf16[2,8,16,8], index: 1, kind: input, shape index: {}]
  %s2 = inlined_call_operand.hbm [shape: f32[2,8,8,8], index: 2, kind: output, shape index: {}]
  %s3 = sld [smem:[#allocation0]]
  $region41: #{tpu_custom_call.1} parent=0
    _
  %s5 = ssub.s32 1, %s3
  %s6 = scalar_select 0, %s5, %s3
  $region1: #{tpu_custom_call.1} parent=0
    #allocation2 [shape = 'u8[32768]{0}', space=vmem, size = 0x8000, scoped, tag = 'output window, operand 0']
    #allocation3 [shape = 's32[2]{0}', space=sflag, size = 0x8, scoped, tag = 'scoped memory for tpu_custom_call.1']
    %7 = vsyncpa [#allocation3], 0
    %s8 = scalar_lea.sflag [#allocation3], 1
    %9 = vsyncpa %s8, 0
    loop: start=0, step=1, limit=6
    $region2: #{tpu_custom_call.1} parent=1 // loop_pre_header
      _
    $region3: #{tpu_custom_call.1} parent=1 // loop_header
      %s11 = sphi 0, %s15
      %p12 = scmp.ge.s32.totalorder %s11, 6
      %s18 = sphi 0, %s30
      %s19 = sphi 0, %s26
      %s20 = sphi 0, %s18
      %s21 = sphi 0, %s19
      %s22 = sphi 0, %s20
      %s23 = sphi 0, %s21
      %s33 = sphi 0, %s35
      %s36 = sphi 0, %s33
      %s37 = sphi 0, %s36
      %s53 = sphi 0, %s37
      %s61 = sphi 0, %s63
      %s64 = sphi 0, %s61
      %s65 = sphi 0, %s64
      %s81 = sphi 0, %s65
      %s89 = sphi 0, %s91
      %s92 = sphi 0, %s89
      %s93 = sphi 0, %s92
      %s109 = sphi 0, %s93
    $region4: #{tpu_custom_call.1} parent=1 // loop_header_branch
      %14 = sbr.rel (%p12) target = $region8
    $region5: #{tpu_custom_call.1} parent=1 // loop_body
      %s16 = ssub.s32 %s11, 1
      %s17 = ssub.s32 %s11, 2
      %s24 = sadd.s32 1, %s19
      %p25 = scmp.ge.s32.totalorder %s24, 2
      %s26 = scalar_select %p25, 0, %s24
      %s27 = sadd.s32 1, %s18
      %s28 = scalar_select %p25, %s27, %s18
      %p29 = scmp.ge.s32.totalorder %s28, 2
      %s30 = scalar_select %p29, 0, %s28
      %s31 = ssub.s32 %s18, %s30
      %p32 = scmp.eq.s32.totalorder %s31, 0
      %s34 = sadd.s32 %s33, 1
      %s35 = scalar_select %p32, %s33, %s34
      %p38 = pneg %p32
      %p39 = scmp.eq.s32.totalorder %s11, 3
      %p40 = por %p38, %p39
      %p41 = scmp.ne.s32.totalorder %s33, %s36
      %p42 = scmp.eq.s32.totalorder %s11, 0
      %p43 = por %p41, %p42
      %p44 = scmp.ne.s32.totalorder %s33, %s36
      %p45 = scmp.eq.s32.totalorder %s16, 3
      %p46 = por %p44, %p45
      %p47 = scmp.ne.s32.totalorder %s36, %s37
      %p48 = scmp.eq.s32.totalorder %s16, 0
      %p49 = por %p47, %p48
      %p50 = scmp.ne.s32.totalorder %s36, %s37
      %p51 = scmp.eq.s32.totalorder %s17, 3
      %p52 = por %p50, %p51
      %p54 = scmp.ne.s32.totalorder %s37, %s53
      %p55 = scmp.eq.s32.totalorder %s17, 0
      %p56 = por %p54, %p55
      %s57 = ssub.s32 %s19, %s26
      %s58 = ssub.s32 %s18, %s30
      %s59 = sor.u32 %s57, %s58
      %p60 = scmp.eq.s32.totalorder %s59, 0
      %s62 = sadd.s32 %s61, 1
      %s63 = scalar_select %p60, %s61, %s62
      %p66 = pneg %p60
      %p67 = scmp.eq.s32.totalorder %s11, 3
      %p68 = por %p66, %p67
      %p69 = scmp.ne.s32.totalorder %s61, %s64
      %p70 = scmp.eq.s32.totalorder %s11, 0
      %p71 = por %p69, %p70
      %p72 = scmp.ne.s32.totalorder %s61, %s64
      %p73 = scmp.eq.s32.totalorder %s16, 3
      %p74 = por %p72, %p73
      %p75 = scmp.ne.s32.totalorder %s64, %s65
      %p76 = scmp.eq.s32.totalorder %s16, 0
      %p77 = por %p75, %p76
      %p78 = scmp.ne.s32.totalorder %s64, %s65
      %p79 = scmp.eq.s32.totalorder %s17, 3
      %p80 = por %p78, %p79
      %p82 = scmp.ne.s32.totalorder %s65, %s81
      %p83 = scmp.eq.s32.totalorder %s17, 0
      %p84 = por %p82, %p83
      %s85 = ssub.s32 %s19, %s26
      %s86 = ssub.s32 %s18, %s30
      %s87 = sor.u32 %s85, %s86
      %p88 = scmp.eq.s32.totalorder %s87, 0
      %s90 = sadd.s32 %s89, 1
      %s91 = scalar_select %p88, %s89, %s90
      %p94 = pneg %p88
      %p95 = scmp.eq.s32.totalorder %s11, 3
      %p96 = por %p94, %p95
      %p97 = scmp.ne.s32.totalorder %s89, %s92
      %p98 = scmp.eq.s32.totalorder %s11, 0
      %p99 = por %p97, %p98
      %p100 = scmp.ne.s32.totalorder %s89, %s92
      %p101 = scmp.eq.s32.totalorder %s16, 3
      %p102 = por %p100, %p101
      %p103 = scmp.ne.s32.totalorder %s92, %s93
      %p104 = scmp.eq.s32.totalorder %s16, 0
      %p105 = por %p103, %p104
      %p106 = scmp.ne.s32.totalorder %s92, %s93
      %p107 = scmp.eq.s32.totalorder %s17, 3
      %p108 = por %p106, %p107
      %p110 = scmp.ne.s32.totalorder %s93, %s109
      %p111 = scmp.eq.s32.totalorder %s17, 0
      %p112 = por %p110, %p111
      %p113 = scmp.le.s32.totalorder 1, %s11
      %p114 = scmp.lt.s32.totalorder %s11, 5
      %p115 = pnand %p113, %p114
      %p116 = pneg %p115
      // Predicated region
      $region9: #{tpu_custom_call.1} parent=5 // pred_check
        _
      $region10: #{tpu_custom_call.1} parent=5 // pred_check_branch
        %118 = sbr.rel (%p115) target = $region12
      $region11: #{tpu_custom_call.1} parent=5 // pred_region
        %s119 = ssub.s32 %s11, 1
      $region12: #{tpu_custom_call.1} parent=5 // pred_fallthru
        _
      %p120 = scmp.lt.s32.totalorder %s11, 4
      // Predicated region
      $region13: #{tpu_custom_call.1} parent=5 // pred_check
        %p121 = pneg %p120
      $region14: #{tpu_custom_call.1} parent=5 // pred_check_branch
        %123 = sbr.rel (%p121) target = $region16
      $region15: #{tpu_custom_call.1} parent=5 // pred_region
        // Predicated region
        $region17: #{tpu_custom_call.1} parent=15 // pred_check
          %p124 = pneg %p43
        $region18: #{tpu_custom_call.1} parent=15 // pred_check_branch
          %126 = sbr.rel (%p124) target = $region20
        $region19: #{tpu_custom_call.1} parent=15 // pred_region
          %s127 = smul.u32 4, %s18
          %p128 = scmp.lt.s32.totalorder %s127, 7
          %s129 = scalar_select %p128, %s127, 7
          %s130 = smul.addr %s129, 4
          %s131 = scalar_lea.vmem %s0, %s130
          %s132 = smul.u32 4, %s18
        $region20: #{tpu_custom_call.1} parent=15 // pred_fallthru
          _
        // Predicated region
        $region21: #{tpu_custom_call.1} parent=15 // pred_check
          %p133 = pneg %p71
        $region22: #{tpu_custom_call.1} parent=15 // pred_check_branch
          %135 = sbr.rel (%p133) target = $region24
        $region23: #{tpu_custom_call.1} parent=15 // pred_region
          %s136 = smul.u32 4, %s18
          %p137 = scmp.lt.s32.totalorder %s19, 1
          %s138 = scalar_select %p137, %s19, 1
          %p139 = scmp.lt.s32.totalorder %s136, 7
          %s140 = scalar_select %p139, %s136, 7
          %s141 = smul.addr %s140, 2
          %s142 = smul.addr %s138, 16
          %s143 = sadd.s32 %s141, %s142
          %s144 = smul.addr %s143, 4
          %s145 = scalar_lea.vmem %s1, %s144
          %s146 = smul.u32 4, %s18
        $region24: #{tpu_custom_call.1} parent=15 // pred_fallthru
          _
      $region16: #{tpu_custom_call.1} parent=5 // pred_fallthru
        _
      %p147 = scmp.le.s32.totalorder 1, %s11
      %p148 = scmp.lt.s32.totalorder %s11, 5
      %p149 = pnand %p147, %p148
      %p150 = pneg %p149
      // Predicated region
      $region25: #{tpu_custom_call.1} parent=5 // pred_check
        _
      $region26: #{tpu_custom_call.1} parent=5 // pred_check_branch
        %152 = sbr.rel (%p149) target = $region28
      $region27: #{tpu_custom_call.1} parent=5 // pred_region
        %s153 = ssub.s32 %s11, 1
        %s154 = smul.u32 4, %s20
        %p155 = scmp.lt.s32.totalorder %s154, 7
        %s156 = scalar_select %p155, %s154, 7
        %s157 = smul.addr %s156, 4
        %s158 = scalar_lea.vmem %s0, %s157
        %p159 = pneg %p49
        %p160 = pneg %p46
        %s161 = smul.u32 4, %s20
        %p162 = scmp.lt.s32.totalorder %s21, 1
        %s163 = scalar_select %p162, %s21, 1
        %p164 = scmp.lt.s32.totalorder %s161, 7
        %s165 = scalar_select %p164, %s161, 7
        %s166 = smul.addr %s165, 2
        %s167 = smul.addr %s163, 16
        %s168 = sadd.s32 %s166, %s167
        %s169 = smul.addr %s168, 4
        %s170 = scalar_lea.vmem %s1, %s169
        %p171 = pneg %p77
        %p172 = pneg %p74
        %p173 = pneg %p105
        %p174 = pneg %p102
        %s175 = sand.u32 %s92, 1
        %s176 = scalar_lea.sflag [#allocation3], %s175
        %s177 = sand.u32 %s92, 1
        %s178 = smul.addr %s177, 32
        %s179 = scalar_lea.vmem [#allocation2], %s178
        %s180 = smul.u32 4, %s20
        %p181 = scmp.lt.s32.totalorder %s180, 7
        %s182 = scalar_select %p181, %s180, 7
        %s183 = smul.addr %s182, 4
        %s184 = scalar_lea.vmem %s0, %s183
        %s185 = smul.u32 4, %s20
        %s186 = smul.u32 4, %s20
        %p187 = scmp.lt.s32.totalorder %s21, 1
        %s188 = scalar_select %p187, %s21, 1
        %p189 = scmp.lt.s32.totalorder %s186, 7
        %s190 = scalar_select %p189, %s186, 7
        %s191 = smul.addr %s190, 2
        %s192 = smul.addr %s188, 16
        %s193 = sadd.s32 %s191, %s192
        %s194 = smul.addr %s193, 4
        %s195 = scalar_lea.vmem %s1, %s194
        %s196 = smul.u32 4, %s20
        %s197 = smul.u32 4, %s20
        %v199 = vld [vmem:[%s184] sm:$0xf]
        %v200 = vld [vmem:[%s184 + $0x4] sm:$0xf]
        %v201 = vld [vmem:[%s184 + $0x8] sm:$0xf]
        %v202 = vld [vmem:[%s184 + $0xc] sm:$0xf]
        %v203 = vld [vmem:[%s195] sm:$0xf]
        %v204 = vld [vmem:[%s195 + $0x4] sm:$0xf]
        %v205 = vld [vmem:[%s195 + $0x8] sm:$0xf]
        %v206 = vld [vmem:[%s195 + $0xc] sm:$0xf]
        %v207 = vld [vmem:[%s195 + $0x10] sm:$0xf]
        %v208 = vld [vmem:[%s195 + $0x14] sm:$0xf]
        %v209 = vld [vmem:[%s195 + $0x18] sm:$0xf]
        %v210 = vld [vmem:[%s195 + $0x1c] sm:$0xf]
        %v213 = vunpack.c.l.b16 %v203
        %v214 = vunpack.c.l.b16 %v204
        %v215 = vpack.c.b16 %v214, %v213
        %vm217 = vcmask 130048
        %v219 = vsel %vm217, %v199, 0
        %221 = vmatprep.subr.bf16.mxu0 0
        %222 = vmatpush1.bf16.msra.mxu0 %v215
        %223 = vmatprep.subr.bf16.mxu0 0
        %224 = vmatpush1.bf16.msra.mxu0 0
        %225 = vmatprep.subr.bf16.mxu0 0
        %226 = vmatpush1.bf16.msra.mxu0 0
        %227 = vmatprep.subr.bf16.mxu0 0
        %228 = vmatpush1.bf16.msra.mxu0 0
        %229 = vmatprep.subr.bf16.mxu0 0
        %230 = vmatpush1.bf16.msra.mxu0 0
        %231 = vmatprep.subr.bf16.mxu0 0
        %232 = vmatpush1.bf16.msra.mxu0 0
        %233 = vmatprep.subr.bf16.mxu0 0
        %234 = vmatpush1.bf16.msra.mxu0 0
        %235 = vmatprep.subr.bf16.mxu0 0
        %236 = vmatpush1.bf16.msra.mxu0 0
        %237 = vmatprep.subr.bf16.mxu0 0
        %238 = vmatpush1.bf16.msra.mxu0 0
        %239 = vmatprep.subr.bf16.mxu0 0
        %240 = vmatpush1.bf16.msra.mxu0 0
        %241 = vmatprep.subr.bf16.mxu0 0
        %242 = vmatpush1.bf16.msra.mxu0 0
        %243 = vmatprep.subr.bf16.mxu0 0
        %244 = vmatpush1.bf16.msra.mxu0 0
        %245 = vmatprep.subr.bf16.mxu0 0
        %246 = vmatpush1.bf16.msra.mxu0 0
        %247 = vmatprep.subr.bf16.mxu0 0
        %248 = vmatpush1.bf16.msra.mxu0 0
        %249 = vmatprep.subr.bf16.mxu0 0
        %250 = vmatpush1.bf16.msra.mxu0 0
        %251 = vmatprep.subr.bf16.mxu0 0
        %252 = vmatpush1.bf16.msra.mxu0 0
        %253 = vmatprep.mubr.bf16.mxu0 0
        %254 = vmatmul.mubr.bf16.gmra.mrb[0].mxu0 %v219
        %v255 = vpop.f32.mrb[0].mxu0
        %v256 = vadd.f32 0.0, %v255
        %v257 = vpop.f32.mrb[0].mxu0
        %v258 = vpop.f32.mrb[0].mxu0
        %v259 = vpop.f32.mrb[0].mxu0
        %260 = vdwg.mxu0
        %v263 = vunpack.c.l.b16 %v205
        %v264 = vunpack.c.l.b16 %v206
        %v265 = vpack.c.b16 %v264, %v263
        %v268 = vsel %vm217, %v200, 0
        %270 = vmatprep.subr.bf16.mxu0 0
        %271 = vmatpush1.bf16.msra.mxu0 %v265
        %272 = vmatprep.subr.bf16.mxu0 0
        %273 = vmatpush1.bf16.msra.mxu0 0
        %274 = vmatprep.subr.bf16.mxu0 0
        %275 = vmatpush1.bf16.msra.mxu0 0
        %276 = vmatprep.subr.bf16.mxu0 0
        %277 = vmatpush1.bf16.msra.mxu0 0
        %278 = vmatprep.subr.bf16.mxu0 0
        %279 = vmatpush1.bf16.msra.mxu0 0
        %280 = vmatprep.subr.bf16.mxu0 0
        %281 = vmatpush1.bf16.msra.mxu0 0
        %282 = vmatprep.subr.bf16.mxu0 0
        %283 = vmatpush1.bf16.msra.mxu0 0
        %284 = vmatprep.subr.bf16.mxu0 0
        %285 = vmatpush1.bf16.msra.mxu0 0
        %286 = vmatprep.subr.bf16.mxu0 0
        %287 = vmatpush1.bf16.msra.mxu0 0
        %288 = vmatprep.subr.bf16.mxu0 0
        %289 = vmatpush1.bf16.msra.mxu0 0
        %290 = vmatprep.subr.bf16.mxu0 0
        %291 = vmatpush1.bf16.msra.mxu0 0
        %292 = vmatprep.subr.bf16.mxu0 0
        %293 = vmatpush1.bf16.msra.mxu0 0
        %294 = vmatprep.subr.bf16.mxu0 0
        %295 = vmatpush1.bf16.msra.mxu0 0
        %296 = vmatprep.subr.bf16.mxu0 0
        %297 = vmatpush1.bf16.msra.mxu0 0
        %298 = vmatprep.subr.bf16.mxu0 0
        %299 = vmatpush1.bf16.msra.mxu0 0
        %300 = vmatprep.subr.bf16.mxu0 0
        %301 = vmatpush1.bf16.msra.mxu0 0
        %302 = vmatprep.mubr.bf16.mxu0 0
        %303 = vmatmul.mubr.bf16.gmra.mrb[0].mxu0 %v268
        %v304 = vpop.f32.mrb[0].mxu0
        %v305 = vadd.f32 0.0, %v304
        %v306 = vpop.f32.mrb[0].mxu0
        %v307 = vpop.f32.mrb[0].mxu0
        %v308 = vpop.f32.mrb[0].mxu0
        %309 = vdwg.mxu0
        %v312 = vunpack.c.l.b16 %v207
        %v313 = vunpack.c.l.b16 %v208
        %v314 = vpack.c.b16 %v313, %v312
        %v317 = vsel %vm217, %v201, 0
        %319 = vmatprep.subr.bf16.mxu0 0
        %320 = vmatpush1.bf16.msra.mxu0 %v314
        %321 = vmatprep.subr.bf16.mxu0 0
        %322 = vmatpush1.bf16.msra.mxu0 0
        %323 = vmatprep.subr.bf16.mxu0 0
        %324 = vmatpush1.bf16.msra.mxu0 0
        %325 = vmatprep.subr.bf16.mxu0 0
        %326 = vmatpush1.bf16.msra.mxu0 0
        %327 = vmatprep.subr.bf16.mxu0 0
        %328 = vmatpush1.bf16.msra.mxu0 0
        %329 = vmatprep.subr.bf16.mxu0 0
        %330 = vmatpush1.bf16.msra.mxu0 0
        %331 = vmatprep.subr.bf16.mxu0 0
        %332 = vmatpush1.bf16.msra.mxu0 0
        %333 = vmatprep.subr.bf16.mxu0 0
        %334 = vmatpush1.bf16.msra.mxu0 0
        %335 = vmatprep.subr.bf16.mxu0 0
        %336 = vmatpush1.bf16.msra.mxu0 0
        %337 = vmatprep.subr.bf16.mxu0 0
        %338 = vmatpush1.bf16.msra.mxu0 0
        %339 = vmatprep.subr.bf16.mxu0 0
        %340 = vmatpush1.bf16.msra.mxu0 0
        %341 = vmatprep.subr.bf16.mxu0 0
        %342 = vmatpush1.bf16.msra.mxu0 0
        %343 = vmatprep.subr.bf16.mxu0 0
        %344 = vmatpush1.bf16.msra.mxu0 0
        %345 = vmatprep.subr.bf16.mxu0 0
        %346 = vmatpush1.bf16.msra.mxu0 0
        %347 = vmatprep.subr.bf16.mxu0 0
        %348 = vmatpush1.bf16.msra.mxu0 0
        %349 = vmatprep.subr.bf16.mxu0 0
        %350 = vmatpush1.bf16.msra.mxu0 0
        %351 = vmatprep.mubr.bf16.mxu0 0
        %352 = vmatmul.mubr.bf16.gmra.mrb[0].mxu0 %v317
        %v353 = vpop.f32.mrb[0].mxu0
        %v354 = vadd.f32 0.0, %v353
        %v355 = vpop.f32.mrb[0].mxu0
        %v356 = vpop.f32.mrb[0].mxu0
        %v357 = vpop.f32.mrb[0].mxu0
        %358 = vdwg.mxu0
        %v361 = vunpack.c.l.b16 %v209
        %v362 = vunpack.c.l.b16 %v210
        %v363 = vpack.c.b16 %v362, %v361
        %v366 = vsel %vm217, %v202, 0
        %368 = vmatprep.subr.bf16.mxu0 0
        %369 = vmatpush1.bf16.msra.mxu0 %v363
        %370 = vmatprep.subr.bf16.mxu0 0
        %371 = vmatpush1.bf16.msra.mxu0 0
        %372 = vmatprep.subr.bf16.mxu0 0
        %373 = vmatpush1.bf16.msra.mxu0 0
        %374 = vmatprep.subr.bf16.mxu0 0
        %375 = vmatpush1.bf16.msra.mxu0 0
        %376 = vmatprep.subr.bf16.mxu0 0
        %377 = vmatpush1.bf16.msra.mxu0 0
        %378 = vmatprep.subr.bf16.mxu0 0
        %379 = vmatpush1.bf16.msra.mxu0 0
        %380 = vmatprep.subr.bf16.mxu0 0
        %381 = vmatpush1.bf16.msra.mxu0 0
        %382 = vmatprep.subr.bf16.mxu0 0
        %383 = vmatpush1.bf16.msra.mxu0 0
        %384 = vmatprep.subr.bf16.mxu0 0
        %385 = vmatpush1.bf16.msra.mxu0 0
        %386 = vmatprep.subr.bf16.mxu0 0
        %387 = vmatpush1.bf16.msra.mxu0 0
        %388 = vmatprep.subr.bf16.mxu0 0
        %389 = vmatpush1.bf16.msra.mxu0 0
        %390 = vmatprep.subr.bf16.mxu0 0
        %391 = vmatpush1.bf16.msra.mxu0 0
        %392 = vmatprep.subr.bf16.mxu0 0
        %393 = vmatpush1.bf16.msra.mxu0 0
        %394 = vmatprep.subr.bf16.mxu0 0
        %395 = vmatpush1.bf16.msra.mxu0 0
        %396 = vmatprep.subr.bf16.mxu0 0
        %397 = vmatpush1.bf16.msra.mxu0 0
        %398 = vmatprep.subr.bf16.mxu0 0
        %399 = vmatpush1.bf16.msra.mxu0 0
        %400 = vmatprep.mubr.bf16.mxu0 0
        %401 = vmatmul.mubr.bf16.gmra.mrb[0].mxu0 %v366
        %v402 = vpop.f32.mrb[0].mxu0
        %v403 = vadd.f32 0.0, %v402
        %v404 = vpop.f32.mrb[0].mxu0
        %v405 = vpop.f32.mrb[0].mxu0
        %v406 = vpop.f32.mrb[0].mxu0
        %407 = vdwg.mxu0
        %vm408 = vcmask 64512
        %409 = vst.msk [vmem:[%s179] sm:$0xff] %vm408, %v256
        %410 = vst.msk [vmem:[%s179 + $0x8] sm:$0xff] %vm408, %v305
        %411 = vst.msk [vmem:[%s179 + $0x10] sm:$0xff] %vm408, %v354
        %412 = vst.msk [vmem:[%s179 + $0x18] sm:$0xff] %vm408, %v403
        %s413 = sand.u32 %s92, 1
        %s414 = scalar_lea.sflag [#allocation3], %s413
        %s415 = sand.u32 %s92, 1
        %s416 = smul.addr %s415, 32
        %s417 = scalar_lea.vmem [#allocation2], %s416
        // Predicated region
        $region29: #{tpu_custom_call.1} parent=27 // pred_check
          %p418 = pneg %p102
        $region30: #{tpu_custom_call.1} parent=27 // pred_check_branch
          %420 = sbr.rel (%p418) target = $region32
        $region31: #{tpu_custom_call.1} parent=27 // pred_region
          %s421 = smul.u32 4, %s20
          %s423 = ssub.s32 512, 512
          %424 = vsyncadd %s414, %s423
          %s425 = smul.addr %s21, 8
          %s426 = sadd.s32 %s421, %s425
          %s427 = smul.addr %s426, 128
          %s428 = scalar_lea.hbm %s2, %s427
          %s429 = sshll.u32 %s417, 4
          %s430 = int_to_ptr.vmem [resolvable:$true] %s429
          %435 = dma.vmem_to_hbm [thread:$0]  %s430, 512, %s428, %s414, 128, 128, 8
        $region32: #{tpu_custom_call.1} parent=27 // pred_fallthru
          _
      $region28: #{tpu_custom_call.1} parent=5 // pred_fallthru
        _
      %p436 = scmp.le.s32.totalorder 2, %s11
      // Predicated region
      $region33: #{tpu_custom_call.1} parent=5 // pred_check
        %p437 = pneg %p436
      $region34: #{tpu_custom_call.1} parent=5 // pred_check_branch
        %439 = sbr.rel (%p437) target = $region36
      $region35: #{tpu_custom_call.1} parent=5 // pred_region
        %s440 = ssub.s32 %s11, 2
        // Predicated region
        $region37: #{tpu_custom_call.1} parent=35 // pred_check
          %p441 = pneg %p108
        $region38: #{tpu_custom_call.1} parent=35 // pred_check_branch
          %443 = sbr.rel (%p441) target = $region40
        $region39: #{tpu_custom_call.1} parent=35 // pred_region
          %s444 = sand.u32 %s93, 1
          %s445 = scalar_lea.sflag [#allocation3], %s444
          %s446 = sand.u32 %s93, 1
          %s447 = smul.addr %s446, 32
          %s448 = scalar_lea.vmem [#allocation2], %s447
          %449 = dma.done %s445, 512
        $region40: #{tpu_custom_call.1} parent=35 // pred_fallthru
          _
      $region36: #{tpu_custom_call.1} parent=5 // pred_fallthru
        _
    $region6: #{tpu_custom_call.1} parent=1 // loop_footer
      %s15 = sadd.s32 1, %s11
    $region7: #{tpu_custom_call.1} parent=1 // loop_footer_branch
      %10 = sbr.rel target = $region3
    $region8: #{tpu_custom_call.1} parent=1 // loop_exit
      _
    %450 = vsyncpa [#allocation3], 1
    %s451 = scalar_lea.sflag [#allocation3], 1
    %452 = vsyncpa %s451, 1

</llo_original>
